<compile_context>
chip_gen: v6e
topology: v6e:2x2x1
jax: 0.10.0
libtpu: 0.0.40
codegen_flags: <defaults>
</compile_context>

<pallas_src>
import functools

import jax
import jax.numpy as jnp
from jax.experimental import pallas as pl
from jax.experimental.pallas import tpu as pltpu

NEG_SLOPE = 0.01  # torch.nn.LeakyReLU default negative_slope


def _leaky_relu(x):
    # Valid because NEG_SLOPE < 1: max(x, a*x) == leaky_relu(x).
    return jnp.maximum(x, NEG_SLOPE * x)


def _round_up(n, m):
    return (n + m - 1) // m * m


def _conv_matmul(w_ref, b_ref, win_ref, tile, *, cin, shifts, pad, pada, tl,
                 stack):
    """One dilated causal conv tile -> MXU matmul(s) with f32 accumulation."""
    if pad == 0:
        acc = jnp.dot(w_ref[...], tile, preferred_element_type=jnp.float32)
    elif stack:
        # Small-C path: tap-stacked single matmul (Co, K*C) @ (K*C, TL).
        parts = [tile if s == 0 else win_ref[:, pada - s:pada - s + tl]
                 for s in shifts]
        acc = jnp.dot(w_ref[...], jnp.concatenate(parts, axis=0),
                      preferred_element_type=jnp.float32)
    else:
        # Large-C path: per-tap accumulating matmuls.  The per-tap contraction
        # already fills an MXU pass, and this avoids building a (K*C, TL)
        # operand in registers (which would spill).
        acc = None
        for j, s in enumerate(shifts):
            wj = w_ref[:, j * cin:(j + 1) * cin]
            xj = tile if s == 0 else win_ref[:, pada - s:pada - s + tl]
            d = jnp.dot(wj, xj, preferred_element_type=jnp.float32)
            acc = d if acc is None else acc + d
    return acc + b_ref[...]


def _causal_block_kernel(x_ref, *refs, K, dilation, pad, pada, tl, ci, co,
                         stack1, stack2, use_res_conv, final, compute_dtype):
    if use_res_conv:
        (w1_ref, b1_ref, w2_ref, b2_ref, wr_ref, br_ref,
         out_ref, xwin_ref, hwin_ref) = refs
    else:
        w1_ref, b1_ref, w2_ref, b2_ref, out_ref, xwin_ref, hwin_ref = refs
        wr_ref = br_ref = None

    lt = pl.program_id(1)
    # tap j multiplies x[:, t - (K-1-j)*dilation]
    shifts = [(K - 1 - j) * dilation for j in range(K)]

    if pad > 0:
        # Zero the causal halo at the start of each batch row's L sweep.
        @pl.when(lt == 0)
        def _init():
            xwin_ref[:, :pada] = jnp.zeros((ci, pada), xwin_ref.dtype)
            hwin_ref[:, :pada] = jnp.zeros((co, pada), hwin_ref.dtype)

    x_tile = x_ref[...]                               # (Ci8, TL) compute_dtype
    if pad > 0:
        xwin_ref[:, pada:] = x_tile

    # ---- conv1 (dilated, causal) + LeakyReLU ----
    h = _leaky_relu(_conv_matmul(w1_ref, b1_ref, xwin_ref, x_tile,
                                 cin=ci, shifts=shifts, pad=pad, pada=pada,
                                 tl=tl, stack=stack1))
    h_c = h.astype(compute_dtype)                     # single cast for conv2
    if pad > 0:
        hwin_ref[:, pada:] = h_c

    # ---- conv2 (dilated, causal) + LeakyReLU ----
    h2 = _leaky_relu(_conv_matmul(w2_ref, b2_ref, hwin_ref, h_c,
                                  cin=co, shifts=shifts, pad=pad, pada=pada,
                                  tl=tl, stack=stack2))

    # ---- residual path ----
    if use_res_conv:
        res = jnp.dot(wr_ref[...], x_tile,
                      preferred_element_type=jnp.float32) + br_ref[...]
    else:
        res = x_tile.astype(jnp.float32)              # identity (Ci8 == Co8)

    out = h2 + res
    if final:
        out = _leaky_relu(out)
    out_ref[...] = out.astype(out_ref.dtype)

    if pad > 0:
        # Carry the last `pad` columns of the extended window as the next
        # tile's causal halo.  Load-then-store keeps this correct even when
        # pad > TL and the regions overlap (Ref value semantics).
        x_halo = xwin_ref[:, pada + tl - pad:pada + tl]
        h_halo = hwin_ref[:, pada + tl - pad:pada + tl]
        xwin_ref[:, pada - pad:pada] = x_halo
        hwin_ref[:, pada - pad:pada] = h_halo


def causal_convolution_block(x, params, *, kernel_size, dilation, final=False,
                             tile_len=1024, compute_dtype=jnp.bfloat16,
                             vmem_budget_bytes=40 << 20):
    """x: (B, C_in, L).
    params: (w1, b1, w2, b2, wr, br) in PyTorch Conv1d layout:
      w1 (C_out, C_in, K), w2 (C_out, C_out, K), wr (C_out, C_in) or None."""
    w1, b1, w2, b2, wr, br = params
    B, C_in, L = x.shape
    C_out, _, K = w1.shape
    assert K == kernel_size
    pad = (K - 1) * dilation
    use_res_conv = wr is not None
    assert use_res_conv or C_in == C_out

    out_dtype = x.dtype
    cbytes = jnp.dtype(compute_dtype).itemsize
    obytes = jnp.dtype(out_dtype).itemsize

    Ci8 = _round_up(C_in, 8)
    Co8 = _round_up(C_out, 8)
    pada = _round_up(pad, 128) if pad > 0 else 0

    # Constant (weight/bias) operands: fetched once (index_map never changes);
    # single-buffer them when the double-buffer waste is meaningful.
    const_bytes = (Co8 * K * Ci8 + Co8 * K * Co8
                   + (Co8 * Ci8 if use_res_conv else 0)) * cbytes
    const_bytes += (3 if use_res_conv else 2) * Co8 * 4
    single_buf_consts = const_bytes >= (2 << 20)
    const_vmem = const_bytes * (1 if single_buf_consts else 2)

    # Pick TL: largest 128-multiple <= tile_len whose working set (double-
    # buffered I/O tiles + windows + constants) fits the VMEM budget
    # (budget chosen to be safe on v7x's 64 MiB VMEM).
    def vmem_estimate(tl):
        act = 2 * Ci8 * tl * cbytes + 2 * Co8 * tl * obytes
        win = (Ci8 + Co8) * (pada + tl) * cbytes if pad > 0 else 0
        return act + win + const_vmem

    TL = min(_round_up(max(tile_len, 128), 128), _round_up(L, 128))
    while TL > 128 and vmem_estimate(TL) > vmem_budget_bytes:
        TL -= 128
    Lp = _round_up(L, TL)
    n_lt = Lp // TL

    # Large-C convs: per-tap accumulation instead of tap-stacking.
    stack1 = Ci8 < 128
    stack2 = Co8 < 128

    # Host-side: cast activations to compute_dtype (streamed through the
    # pipeline at half width when bf16) and alignment-pad (no causal pre-pad).
    xp = x.astype(compute_dtype)
    if Ci8 != C_in or Lp != L:
        xp = jnp.pad(xp, ((0, 0), (0, Ci8 - C_in), (0, Lp - L)))

    def stack_weight(w, co, ci):
        # (C_out, C_in, K) -> (co, K*ci), rows ordered tap-major; slicing
        # [:, j*ci:(j+1)*ci] recovers tap j's weight for the per-tap path.
        wp = jnp.pad(w, ((0, co - w.shape[0]), (0, ci - w.shape[1]), (0, 0)))
        return jnp.transpose(wp, (0, 2, 1)).reshape(co, K * ci).astype(compute_dtype)

    w1s = stack_weight(w1, Co8, Ci8)
    w2s = stack_weight(w2, Co8, Co8)
    b1c = jnp.pad(b1, (0, Co8 - C_out)).reshape(Co8, 1).astype(jnp.float32)
    b2c = jnp.pad(b2, (0, Co8 - C_out)).reshape(Co8, 1).astype(jnp.float32)

    def const_spec(shape):
        if single_buf_consts:
            return pl.BlockSpec(shape, lambda b, lt: (0, 0),
                                pipeline_mode=pl.Buffered(1))
        return pl.BlockSpec(shape, lambda b, lt: (0, 0))

    inputs = [xp, w1s, b1c, w2s, b2c]
    in_specs = [
        pl.BlockSpec((None, Ci8, TL), lambda b, lt: (b, 0, lt)),
        const_spec((Co8, K * Ci8)),
        const_spec((Co8, 1)),
        const_spec((Co8, K * Co8)),
        const_spec((Co8, 1)),
    ]
    if use_res_conv:
        wrp = jnp.pad(wr, ((0, Co8 - C_out), (0, Ci8 - C_in))).astype(compute_dtype)
        brc = jnp.pad(br, (0, Co8 - C_out)).reshape(Co8, 1).astype(jnp.float32)
        inputs += [wrp, brc]
        in_specs += [const_spec((Co8, Ci8)), const_spec((Co8, 1))]

    if pad > 0:
        xwin_shape = (Ci8, pada + TL)
        hwin_shape = (Co8, pada + TL)
    else:  # K == 1: no left context needed; dummy (unused) scratch
        xwin_shape = hwin_shape = (8, 128)

    kern = functools.partial(
        _causal_block_kernel, K=K, dilation=dilation, pad=pad, pada=pada,
        tl=TL, ci=Ci8, co=Co8, stack1=stack1, stack2=stack2,
        use_res_conv=use_res_conv, final=final, compute_dtype=compute_dtype)

    vmem_limit = int(min(56 << 20,
                         max(32 << 20, vmem_estimate(TL) * 1.4 + (2 << 20))))

    out = pl.pallas_call(
        kern,
        out_shape=jax.ShapeDtypeStruct((B, Co8, Lp), out_dtype),
        grid=(B, n_lt),
        in_specs=in_specs,
        out_specs=pl.BlockSpec((None, Co8, TL), lambda b, lt: (b, 0, lt)),
        scratch_shapes=[pltpu.VMEM(xwin_shape, compute_dtype),
                        pltpu.VMEM(hwin_shape, compute_dtype)],
        compiler_params=pltpu.CompilerParams(
            dimension_semantics=("parallel", "arbitrary"),
            vmem_limit_bytes=vmem_limit),
    )(*inputs)

    if Co8 == C_out and Lp == L:
        return out
    return out[:, :C_out, :L]


def make_params(key, C_in, C_out, K):
    """Deterministic init mirroring the module's parameters (torch layout).
    weight_norm: w = g * v / ||v||, norm per out-channel over (in, k)."""
    ks = jax.random.split(key, 8)

    def weight_norm(v, g):
        norm = jnp.sqrt(jnp.sum(v * v, axis=(1, 2), keepdims=True))
        return g.reshape(-1, 1, 1) * v / norm

    v1 = jax.random.normal(ks[0], (C_out, C_in, K), jnp.float32) * 0.3
    g1 = jax.random.uniform(ks[1], (C_out,), jnp.float32, minval=0.5, maxval=1.5)
    b1 = jax.random.normal(ks[2], (C_out,), jnp.float32) * 0.1
    v2 = jax.random.normal(ks[3], (C_out, C_out, K), jnp.float32) * 0.3
    g2 = jax.random.uniform(ks[4], (C_out,), jnp.float32, minval=0.5, maxval=1.5)
    b2 = jax.random.normal(ks[5], (C_out,), jnp.float32) * 0.1

    w1 = weight_norm(v1, g1)                    # (C_out, C_in, K)
    w2 = weight_norm(v2, g2)                    # (C_out, C_out, K)

    if C_in != C_out:
        wr = jax.random.normal(ks[6], (C_out, C_in), jnp.float32) * 0.3
        br = jax.random.normal(ks[7], (C_out,), jnp.float32) * 0.1
    else:
        wr, br = None, None
    return w1, b1, w2, b2, wr, br


def reference_block(x, params, *, kernel_size, dilation, final=False):
    """Pure-JAX reference of the same forward pass (for verification)."""
    w1, b1, w2, b2, wr, br = params
    pad = (kernel_size - 1) * dilation
    B, C_in, L = x.shape

    def causal_conv(inp, w, b):
        xpad = jnp.pad(inp, ((0, 0), (0, 0), (pad, 0)))
        out = b[None, :, None]
        for j in range(kernel_size):
            out = out + jnp.einsum('oc,bcl->bol', w[:, :, j],
                                   xpad[:, :, j * dilation: j * dilation + L])
        return out

    h = jax.nn.leaky_relu(causal_conv(x, w1, b1), NEG_SLOPE)
    h2 = jax.nn.leaky_relu(causal_conv(h, w2, b2), NEG_SLOPE)
    res = x if wr is None else jnp.einsum('oc,bcl->bol', wr, x) + br[None, :, None]
    out = h2 + res
    return jax.nn.leaky_relu(out, NEG_SLOPE) if final else out


if __name__ == "__main__":
    B, C_in, C_out, L = 2, 4, 8, 300
    kernel_size, dilation, final = 3, 4, False        # pad = 8

    key = jax.random.PRNGKey(0)
    kx, kp = jax.random.split(key)
    x = jax.random.normal(kx, (B, C_in, L), jnp.float32)
    params = make_params(kp, C_in, C_out, kernel_size)
    ref = reference_block(x, params, kernel_size=kernel_size,
                          dilation=dilation, final=final)

    # f32 MXU operands; tile_len=128 -> 3 L-tiles, exercises the halo carry.
    out = causal_convolution_block(x, params, kernel_size=kernel_size,
                                   dilation=dilation, final=final,
                                   tile_len=128, compute_dtype=jnp.float32)
    out = jax.block_until_ready(out)
    assert out.shape == (B, C_out, L)
    assert jnp.allclose(out, ref, atol=1e-5, rtol=1e-5), "f32 mismatch"

    # Default path: bf16 streamed activations / windows / MXU operands with
    # f32 accumulation -> looser tolerance.
    out_bf16 = causal_convolution_block(x, params, kernel_size=kernel_size,
                                        dilation=dilation, final=final,
                                        tile_len=128)
    out_bf16 = jax.block_until_ready(out_bf16)
    assert jnp.allclose(out_bf16, ref, atol=1e-1, rtol=1e-1), "bf16 mismatch"

    # Large dilation: pad (160) > tile (128), stresses the overlapping halo carry.
    out_ld = causal_convolution_block(x, params, kernel_size=kernel_size,
                                      dilation=80, final=final, tile_len=128,
                                      compute_dtype=jnp.float32)
    out_ld = jax.block_until_ready(out_ld)
    ref_ld = reference_block(x, params, kernel_size=kernel_size,
                             dilation=80, final=final)
    assert jnp.allclose(out_ld, ref_ld, atol=1e-5, rtol=1e-5), "large-dilation mismatch"

    # Identity residual (C_in == C_out) with final activation.
    params_id = make_params(kp, C_out, C_out, kernel_size)
    x_id = jax.random.normal(kx, (B, C_out, L), jnp.float32)
    out_id = causal_convolution_block(x_id, params_id, kernel_size=kernel_size,
                                      dilation=dilation, final=True,
                                      tile_len=128, compute_dtype=jnp.float32)
    out_id = jax.block_until_ready(out_id)
    ref_id = reference_block(x_id, params_id, kernel_size=kernel_size,
                             dilation=dilation, final=True)
    assert jnp.allclose(out_id, ref_id, atol=1e-5, rtol=1e-5), "identity-res mismatch"

    # Large-C path (C_out = 128 -> per-tap accumulating matmuls for conv2).
    params_lc = make_params(kp, 16, 128, kernel_size)
    x_lc = jax.random.normal(kx, (B, 16, 256), jnp.float32)
    out_lc = causal_convolution_block(x_lc, params_lc, kernel_size=kernel_size,
                                      dilation=2, final=final, tile_len=128,
                                      compute_dtype=jnp.float32)
    out_lc = jax.block_until_ready(out_lc)
    ref_lc = reference_block(x_lc, params_lc, kernel_size=kernel_size,
                             dilation=2, final=final)
    assert jnp.allclose(out_lc, ref_lc, atol=1e-5, rtol=1e-5), "large-C mismatch"

    print("KERNEL_OK")
</pallas_src>

<mosaic_0001>
module attributes {stable_mosaic.version = 11 : i64} {
  func.func @_causal_block_kernel(%arg0: i32, %arg1: i32, %arg2: memref<1x8x128xf32, #tpu.memory_space<vmem>>, %arg3: memref<8x24xf32, #tpu.memory_space<vmem>>, %arg4: memref<8x1xf32, #tpu.memory_space<vmem>>, %arg5: memref<8x24xf32, #tpu.memory_space<vmem>>, %arg6: memref<8x1xf32, #tpu.memory_space<vmem>>, %arg7: memref<8x8xf32, #tpu.memory_space<vmem>>, %arg8: memref<8x1xf32, #tpu.memory_space<vmem>>, %arg9: memref<1x8x128xf32, #tpu.memory_space<vmem>>, %arg10: memref<8x256xf32, #tpu.memory_space<vmem>>, %arg11: memref<8x256xf32, #tpu.memory_space<vmem>>) attributes {dimension_semantics = [#tpu.dimension_semantics<parallel>, #tpu.dimension_semantics<arbitrary>], iteration_bounds = array<i64: 2, 3>, scalar_prefetch = 0 : i64, scratch_operands = 2 : i64, tpu.core_type = #tpu.core_type<tc>, window_params = [{transform_indices = @transform_0, window_bounds = array<i64: 1, 8, 128>}, {pipeline_mode = #tpu.pipeline_mode<synchronous>, transform_indices = @transform_1, window_bounds = array<i64: 8, 24>}, {pipeline_mode = #tpu.pipeline_mode<synchronous>, transform_indices = @transform_2, window_bounds = array<i64: 8, 1>}, {pipeline_mode = #tpu.pipeline_mode<synchronous>, transform_indices = @transform_3, window_bounds = array<i64: 8, 24>}, {pipeline_mode = #tpu.pipeline_mode<synchronous>, transform_indices = @transform_4, window_bounds = array<i64: 8, 1>}, {pipeline_mode = #tpu.pipeline_mode<synchronous>, transform_indices = @transform_5, window_bounds = array<i64: 8, 8>}, {pipeline_mode = #tpu.pipeline_mode<synchronous>, transform_indices = @transform_6, window_bounds = array<i64: 8, 1>}, {transform_indices = @transform_7, window_bounds = array<i64: 1, 8, 128>}]} {
    %c0_i32 = arith.constant 0 : i32
    %0 = arith.cmpi eq, %arg1, %c0_i32 : i32
    %1 = arith.extui %0 : i1 to i32
    %c0_i32_0 = arith.constant 0 : i32
    %2 = arith.cmpi ne, %1, %c0_i32_0 : i32
    scf.if %2 {
      %cst_38 = arith.constant 0.000000e+00 : f32
      %42 = vector.broadcast %cst_38 : f32 to vector<8x128xf32>
      %c0_39 = arith.constant 0 : index
      %c0_40 = arith.constant 0 : index
      %43 = vector.load %arg10[%c0_39, %c0_40] : memref<8x256xf32, #tpu.memory_space<vmem>>, vector<8x128xf32>
      tpu.vector_store %arg10[%c0_39, %c0_40], %42 {strides = array<i32>} : memref<8x256xf32, #tpu.memory_space<vmem>>, vector<8x128xf32>,
      %cst_41 = arith.constant 0.000000e+00 : f32
      %44 = vector.broadcast %cst_41 : f32 to vector<8x128xf32>
      %c0_42 = arith.constant 0 : index
      %c0_43 = arith.constant 0 : index
      %45 = vector.load %arg11[%c0_42, %c0_43] : memref<8x256xf32, #tpu.memory_space<vmem>>, vector<8x128xf32>
      tpu.vector_store %arg11[%c0_42, %c0_43], %44 {strides = array<i32>} : memref<8x256xf32, #tpu.memory_space<vmem>>, vector<8x128xf32>,
    } else {
    }
    %c0 = arith.constant 0 : index
    %c0_1 = arith.constant 0 : index
    %c0_2 = arith.constant 0 : index
    %3 = vector.load %arg2[%c0, %c0_1, %c0_2] : memref<1x8x128xf32, #tpu.memory_space<vmem>>, vector<1x8x128xf32>
    %4 = vector.shape_cast %3 : vector<1x8x128xf32> to vector<8x128xf32>
    %c0_3 = arith.constant 0 : index
    %c128 = arith.constant 128 : index
    %5 = vector.load %arg10[%c0_3, %c128] : memref<8x256xf32, #tpu.memory_space<vmem>>, vector<8x128xf32>
    tpu.vector_store %arg10[%c0_3, %c128], %4 {strides = array<i32>} : memref<8x256xf32, #tpu.memory_space<vmem>>, vector<8x128xf32>,
    %c0_4 = arith.constant 0 : index
    %c120 = arith.constant 120 : index
    %6 = vector.load %arg10[%c0_4, %c120] : memref<8x256xf32, #tpu.memory_space<vmem>>, vector<8x128xf32>
    %c0_5 = arith.constant 0 : index
    %c124 = arith.constant 124 : index
    %7 = vector.load %arg10[%c0_5, %c124] : memref<8x256xf32, #tpu.memory_space<vmem>>, vector<8x128xf32>
    %c0_6 = arith.constant 0 : index
    %c0_7 = arith.constant 0 : index
    %8 = vector.load %arg3[%c0_6, %c0_7] : memref<8x24xf32, #tpu.memory_space<vmem>>, vector<8x24xf32>
    %9 = tpu.concatenate %6, %7, %4 in 0 : vector<8x128xf32>, vector<8x128xf32>, vector<8x128xf32> -> vector<24x128xf32>
    %cst = arith.constant dense<0.000000e+00> : vector<8x128xf32>
    %10 = tpu.matmul %8, %9, %cst {dimension_numbers = #tpu.dot_dimension_numbers<[1], [0], [0], [1], [0, 0, 1, 1], [], []>} : vector<8x24xf32>, vector<24x128xf32>, vector<8x128xf32> -> vector<8x128xf32>
    %c0_8 = arith.constant 0 : index
    %c0_9 = arith.constant 0 : index
    %11 = vector.load %arg4[%c0_8, %c0_9] : memref<8x1xf32, #tpu.memory_space<vmem>>, vector<8x1xf32>
    %12 = vector.broadcast %11 : vector<8x1xf32> to vector<8x128xf32>
    %13 = arith.addf %10, %12 : vector<8x128xf32>
    %cst_10 = arith.constant 0.00999999977 : f32
    %14 = vector.broadcast %cst_10 : f32 to vector<8x128xf32>
    %15 = arith.mulf %14, %13 : vector<8x128xf32>
    %16 = arith.maximumf %13, %15 : vector<8x128xf32>
    %c0_11 = arith.constant 0 : index
    %c128_12 = arith.constant 128 : index
    %17 = vector.load %arg11[%c0_11, %c128_12] : memref<8x256xf32, #tpu.memory_space<vmem>>, vector<8x128xf32>
    tpu.vector_store %arg11[%c0_11, %c128_12], %16 {strides = array<i32>} : memref<8x256xf32, #tpu.memory_space<vmem>>, vector<8x128xf32>,
    %c0_13 = arith.constant 0 : index
    %c120_14 = arith.constant 120 : index
    %18 = vector.load %arg11[%c0_13, %c120_14] : memref<8x256xf32, #tpu.memory_space<vmem>>, vector<8x128xf32>
    %c0_15 = arith.constant 0 : index
    %c124_16 = arith.constant 124 : index
    %19 = vector.load %arg11[%c0_15, %c124_16] : memref<8x256xf32, #tpu.memory_space<vmem>>, vector<8x128xf32>
    %c0_17 = arith.constant 0 : index
    %c0_18 = arith.constant 0 : index
    %20 = vector.load %arg5[%c0_17, %c0_18] : memref<8x24xf32, #tpu.memory_space<vmem>>, vector<8x24xf32>
    %21 = tpu.concatenate %18, %19, %16 in 0 : vector<8x128xf32>, vector<8x128xf32>, vector<8x128xf32> -> vector<24x128xf32>
    %cst_19 = arith.constant dense<0.000000e+00> : vector<8x128xf32>
    %22 = tpu.matmul %20, %21, %cst_19 {dimension_numbers = #tpu.dot_dimension_numbers<[1], [0], [0], [1], [0, 0, 1, 1], [], []>} : vector<8x24xf32>, vector<24x128xf32>, vector<8x128xf32> -> vector<8x128xf32>
    %c0_20 = arith.constant 0 : index
    %c0_21 = arith.constant 0 : index
    %23 = vector.load %arg6[%c0_20, %c0_21] : memref<8x1xf32, #tpu.memory_space<vmem>>, vector<8x1xf32>
    %24 = vector.broadcast %23 : vector<8x1xf32> to vector<8x128xf32>
    %25 = arith.addf %22, %24 : vector<8x128xf32>
    %cst_22 = arith.constant 0.00999999977 : f32
    %26 = vector.broadcast %cst_22 : f32 to vector<8x128xf32>
    %27 = arith.mulf %26, %25 : vector<8x128xf32>
    %28 = arith.maximumf %25, %27 : vector<8x128xf32>
    %c0_23 = arith.constant 0 : index
    %c0_24 = arith.constant 0 : index
    %29 = vector.load %arg7[%c0_23, %c0_24] : memref<8x8xf32, #tpu.memory_space<vmem>>, vector<8x8xf32>
    %cst_25 = arith.constant dense<0.000000e+00> : vector<8x128xf32>
    %30 = tpu.matmul %29, %4, %cst_25 {dimension_numbers = #tpu.dot_dimension_numbers<[1], [0], [0], [1], [0, 0, 1, 1], [], []>} : vector<8x8xf32>, vector<8x128xf32>, vector<8x128xf32> -> vector<8x128xf32>
    %c0_26 = arith.constant 0 : index
    %c0_27 = arith.constant 0 : index
    %31 = vector.load %arg8[%c0_26, %c0_27] : memref<8x1xf32, #tpu.memory_space<vmem>>, vector<8x1xf32>
    %32 = vector.broadcast %31 : vector<8x1xf32> to vector<8x128xf32>
    %33 = arith.addf %30, %32 : vector<8x128xf32>
    %34 = arith.addf %28, %33 : vector<8x128xf32>
    %c0_28 = arith.constant 0 : index
    %c0_29 = arith.constant 0 : index
    %c0_30 = arith.constant 0 : index
    %35 = vector.load %arg9[%c0_28, %c0_29, %c0_30] : memref<1x8x128xf32, #tpu.memory_space<vmem>>, vector<1x8x128xf32>
    %36 = vector.shape_cast %35 : vector<1x8x128xf32> to vector<8x128xf32>
    %37 = vector.shape_cast %34 : vector<8x128xf32> to vector<1x8x128xf32>
    tpu.vector_store %arg9[%c0_28, %c0_29, %c0_30], %37 {strides = array<i32>} : memref<1x8x128xf32, #tpu.memory_space<vmem>>, vector<1x8x128xf32>,
    %c0_31 = arith.constant 0 : index
    %c248 = arith.constant 248 : index
    %38 = vector.load %arg10[%c0_31, %c248] : memref<8x256xf32, #tpu.memory_space<vmem>>, vector<8x8xf32>
    %c0_32 = arith.constant 0 : index
    %c248_33 = arith.constant 248 : index
    %39 = vector.load %arg11[%c0_32, %c248_33] : memref<8x256xf32, #tpu.memory_space<vmem>>, vector<8x8xf32>
    %c0_34 = arith.constant 0 : index
    %c120_35 = arith.constant 120 : index
    %40 = vector.load %arg10[%c0_34, %c120_35] : memref<8x256xf32, #tpu.memory_space<vmem>>, vector<8x8xf32>
    tpu.vector_store %arg10[%c0_34, %c120_35], %38 {strides = array<i32>} : memref<8x256xf32, #tpu.memory_space<vmem>>, vector<8x8xf32>,
    %c0_36 = arith.constant 0 : index
    %c120_37 = arith.constant 120 : index
    %41 = vector.load %arg11[%c0_36, %c120_37] : memref<8x256xf32, #tpu.memory_space<vmem>>, vector<8x8xf32>
    tpu.vector_store %arg11[%c0_36, %c120_37], %39 {strides = array<i32>} : memref<8x256xf32, #tpu.memory_space<vmem>>, vector<8x8xf32>,
    return
  }
  func.func @transform_0(%arg0: i32, %arg1: i32) -> (i32, i32, i32) {
    %c0_i32 = arith.constant 0 : i32
    %c0_i32_0 = arith.constant 0 : i32
    return %arg0, %c0_i32, %arg1 : i32, i32, i32
  }
  func.func @transform_1(%arg0: i32, %arg1: i32) -> (i32, i32) {
    %c0_i32 = arith.constant 0 : i32
    %c0_i32_0 = arith.constant 0 : i32
    %c0_i32_1 = arith.constant 0 : i32
    return %c0_i32, %c0_i32_0 : i32, i32
  }
  func.func @transform_2(%arg0: i32, %arg1: i32) -> (i32, i32) {
    %c0_i32 = arith.constant 0 : i32
    %c0_i32_0 = arith.constant 0 : i32
    %c0_i32_1 = arith.constant 0 : i32
    return %c0_i32, %c0_i32_0 : i32, i32
  }
  func.func @transform_3(%arg0: i32, %arg1: i32) -> (i32, i32) {
    %c0_i32 = arith.constant 0 : i32
    %c0_i32_0 = arith.constant 0 : i32
    %c0_i32_1 = arith.constant 0 : i32
    return %c0_i32, %c0_i32_0 : i32, i32
  }
  func.func @transform_4(%arg0: i32, %arg1: i32) -> (i32, i32) {
    %c0_i32 = arith.constant 0 : i32
    %c0_i32_0 = arith.constant 0 : i32
    %c0_i32_1 = arith.constant 0 : i32
    return %c0_i32, %c0_i32_0 : i32, i32
  }
  func.func @transform_5(%arg0: i32, %arg1: i32) -> (i32, i32) {
    %c0_i32 = arith.constant 0 : i32
    %c0_i32_0 = arith.constant 0 : i32
    %c0_i32_1 = arith.constant 0 : i32
    return %c0_i32, %c0_i32_0 : i32, i32
  }
  func.func @transform_6(%arg0: i32, %arg1: i32) -> (i32, i32) {
    %c0_i32 = arith.constant 0 : i32
    %c0_i32_0 = arith.constant 0 : i32
    %c0_i32_1 = arith.constant 0 : i32
    return %c0_i32, %c0_i32_0 : i32, i32
  }
  func.func @transform_7(%arg0: i32, %arg1: i32) -> (i32, i32, i32) {
    %c0_i32 = arith.constant 0 : i32
    %c0_i32_0 = arith.constant 0 : i32
    return %arg0, %c0_i32, %arg1 : i32, i32, i32
  }
}

</mosaic_0001>

<llo_original>
// kernel: tpu_custom_call.1
$region0: #{tpu_custom_call.1}
  #allocation0 [shape = 'u32[]', space=smem, size = 0x4, offset = 0x4, fixed_abs, tag = 'smem constant byte address 0x4 - core index']
  #allocation1 [shape = 'u32[144,128]{1,0:T(1,128)}', space=vmem, size = 0x12000, scoped, tag = 'internal scratch']
  #allocation2 [shape = 'f32[8,256]{1,0:T(8,128)}', space=vmem, size = 0x2000, scoped, tag = 'scratch operand']
  #allocation3 [shape = 'f32[8,256]{1,0:T(8,128)}', space=vmem, size = 0x2000, scoped, tag = 'scratch operand']
  %s0 = inlined_call_operand.hbm [shape: f32[2,8,384], index: 0, kind: input, shape index: {}]
  %s1 = inlined_call_operand.vmem [shape: f32[8,24], index: 1, kind: input, shape index: {}]
  %s2 = inlined_call_operand.vmem [shape: f32[8,1], index: 2, kind: input, shape index: {}]
  %s3 = inlined_call_operand.vmem [shape: f32[8,24], index: 3, kind: input, shape index: {}]
  %s4 = inlined_call_operand.vmem [shape: f32[8,1], index: 4, kind: input, shape index: {}]
  %s5 = inlined_call_operand.vmem [shape: f32[8,8], index: 5, kind: input, shape index: {}]
  %s6 = inlined_call_operand.vmem [shape: f32[8,1], index: 6, kind: input, shape index: {}]
  %s7 = inlined_call_operand.hbm [shape: f32[2,8,384], index: 7, kind: output, shape index: {}]
  %s8 = sld [smem:[#allocation0]]
  $region69: #{tpu_custom_call.1} parent=0
    _
  %s10 = ssub.s32 1, %s8
  %s11 = scalar_select 0, %s10, %s8
  $region1: #{tpu_custom_call.1} parent=0
    #allocation4 [shape = 'u8[8192]{0}', space=vmem, size = 0x2000, scoped, tag = 'input window, operand 0']
    #allocation5 [shape = 's32[2]{0}', space=sflag, size = 0x8, scoped, tag = 'scoped memory for tpu_custom_call.1']
    #allocation6 [shape = 's32[2]{0}', space=sflag, size = 0x8, scoped, tag = 'scoped memory for tpu_custom_call.1']
    #allocation7 [shape = 'u8[8192]{0}', space=vmem, size = 0x2000, scoped, tag = 'output window, operand 0']
    %12 = vsyncpa [#allocation5], 0
    %s13 = scalar_lea.sflag [#allocation5], 1
    %14 = vsyncpa %s13, 0
    %15 = vsyncpa [#allocation6], 0
    %s16 = scalar_lea.sflag [#allocation6], 1
    %17 = vsyncpa %s16, 0
    loop: start=0, step=1, limit=8
    $region2: #{tpu_custom_call.1} parent=1 // loop_pre_header
      _
    $region3: #{tpu_custom_call.1} parent=1 // loop_header
      %s19 = sphi 0, %s23
      %p20 = scmp.ge.s32.totalorder %s19, 8
      %s26 = sphi 0, %s38
      %s27 = sphi 0, %s34
      %s28 = sphi 0, %s26
      %s29 = sphi 0, %s27
      %s30 = sphi 0, %s28
      %s31 = sphi 0, %s29
      %s43 = sphi 0, %s45
      %s46 = sphi 0, %s43
      %s47 = sphi 0, %s46
      %s63 = sphi 0, %s47
      %s67 = sphi 0, %s67
      %s69 = sphi 0, %s67
      %s70 = sphi 0, %s69
      %s84 = sphi 0, %s70
      %s88 = sphi 0, %s88
      %s90 = sphi 0, %s88
      %s91 = sphi 0, %s90
      %s105 = sphi 0, %s91
      %s109 = sphi 0, %s109
      %s111 = sphi 0, %s109
      %s112 = sphi 0, %s111
      %s126 = sphi 0, %s112
      %s130 = sphi 0, %s130
      %s132 = sphi 0, %s130
      %s133 = sphi 0, %s132
      %s147 = sphi 0, %s133
      %s151 = sphi 0, %s151
      %s153 = sphi 0, %s151
      %s154 = sphi 0, %s153
      %s168 = sphi 0, %s154
      %s172 = sphi 0, %s172
      %s174 = sphi 0, %s172
      %s175 = sphi 0, %s174
      %s189 = sphi 0, %s175
      %s197 = sphi 0, %s199
      %s200 = sphi 0, %s197
      %s201 = sphi 0, %s200
      %s217 = sphi 0, %s201
    $region4: #{tpu_custom_call.1} parent=1 // loop_header_branch
      %22 = sbr.rel (%p20) target = $region8
    $region5: #{tpu_custom_call.1} parent=1 // loop_body
      %s24 = ssub.s32 %s19, 1
      %s25 = ssub.s32 %s19, 2
      %s32 = sadd.s32 1, %s27
      %p33 = scmp.ge.s32.totalorder %s32, 3
      %s34 = scalar_select %p33, 0, %s32
      %s35 = sadd.s32 1, %s26
      %s36 = scalar_select %p33, %s35, %s26
      %p37 = scmp.ge.s32.totalorder %s36, 2
      %s38 = scalar_select %p37, 0, %s36
      %s39 = ssub.s32 %s26, %s38
      %s40 = ssub.s32 %s27, %s34
      %s41 = sor.u32 %s39, %s40
      %p42 = scmp.eq.s32.totalorder %s41, 0
      %s44 = sadd.s32 %s43, 1
      %s45 = scalar_select %p42, %s43, %s44
      %p48 = pneg %p42
      %p49 = scmp.eq.s32.totalorder %s19, 5
      %p50 = por %p48, %p49
      %p51 = scmp.ne.s32.totalorder %s43, %s46
      %p52 = scmp.eq.s32.totalorder %s19, 0
      %p53 = por %p51, %p52
      %p54 = scmp.ne.s32.totalorder %s43, %s46
      %p55 = scmp.eq.s32.totalorder %s24, 5
      %p56 = por %p54, %p55
      %p57 = scmp.ne.s32.totalorder %s46, %s47
      %p58 = scmp.eq.s32.totalorder %s24, 0
      %p59 = por %p57, %p58
      %p60 = scmp.ne.s32.totalorder %s46, %s47
      %p61 = scmp.eq.s32.totalorder %s25, 5
      %p62 = por %p60, %p61
      %p64 = scmp.ne.s32.totalorder %s47, %s63
      %p65 = scmp.eq.s32.totalorder %s25, 0
      %p66 = por %p64, %p65
      %s68 = sadd.s32 %s67, 1
      %p71 = scmp.eq.s32.totalorder %s19, 5
      %p72 = scmp.ne.s32.totalorder %s67, %s69
      %p73 = scmp.eq.s32.totalorder %s19, 0
      %p74 = por %p72, %p73
      %p75 = scmp.ne.s32.totalorder %s67, %s69
      %p76 = scmp.eq.s32.totalorder %s24, 5
      %p77 = por %p75, %p76
      %p78 = scmp.ne.s32.totalorder %s69, %s70
      %p79 = scmp.eq.s32.totalorder %s24, 0
      %p80 = por %p78, %p79
      %p81 = scmp.ne.s32.totalorder %s69, %s70
      %p82 = scmp.eq.s32.totalorder %s25, 5
      %p83 = por %p81, %p82
      %p85 = scmp.ne.s32.totalorder %s70, %s84
      %p86 = scmp.eq.s32.totalorder %s25, 0
      %p87 = por %p85, %p86
      %s89 = sadd.s32 %s88, 1
      %p92 = scmp.eq.s32.totalorder %s19, 5
      %p93 = scmp.ne.s32.totalorder %s88, %s90
      %p94 = scmp.eq.s32.totalorder %s19, 0
      %p95 = por %p93, %p94
      %p96 = scmp.ne.s32.totalorder %s88, %s90
      %p97 = scmp.eq.s32.totalorder %s24, 5
      %p98 = por %p96, %p97
      %p99 = scmp.ne.s32.totalorder %s90, %s91
      %p100 = scmp.eq.s32.totalorder %s24, 0
      %p101 = por %p99, %p100
      %p102 = scmp.ne.s32.totalorder %s90, %s91
      %p103 = scmp.eq.s32.totalorder %s25, 5
      %p104 = por %p102, %p103
      %p106 = scmp.ne.s32.totalorder %s91, %s105
      %p107 = scmp.eq.s32.totalorder %s25, 0
      %p108 = por %p106, %p107
      %s110 = sadd.s32 %s109, 1
      %p113 = scmp.eq.s32.totalorder %s19, 5
      %p114 = scmp.ne.s32.totalorder %s109, %s111
      %p115 = scmp.eq.s32.totalorder %s19, 0
      %p116 = por %p114, %p115
      %p117 = scmp.ne.s32.totalorder %s109, %s111
      %p118 = scmp.eq.s32.totalorder %s24, 5
      %p119 = por %p117, %p118
      %p120 = scmp.ne.s32.totalorder %s111, %s112
      %p121 = scmp.eq.s32.totalorder %s24, 0
      %p122 = por %p120, %p121
      %p123 = scmp.ne.s32.totalorder %s111, %s112
      %p124 = scmp.eq.s32.totalorder %s25, 5
      %p125 = por %p123, %p124
      %p127 = scmp.ne.s32.totalorder %s112, %s126
      %p128 = scmp.eq.s32.totalorder %s25, 0
      %p129 = por %p127, %p128
      %s131 = sadd.s32 %s130, 1
      %p134 = scmp.eq.s32.totalorder %s19, 5
      %p135 = scmp.ne.s32.totalorder %s130, %s132
      %p136 = scmp.eq.s32.totalorder %s19, 0
      %p137 = por %p135, %p136
      %p138 = scmp.ne.s32.totalorder %s130, %s132
      %p139 = scmp.eq.s32.totalorder %s24, 5
      %p140 = por %p138, %p139
      %p141 = scmp.ne.s32.totalorder %s132, %s133
      %p142 = scmp.eq.s32.totalorder %s24, 0
      %p143 = por %p141, %p142
      %p144 = scmp.ne.s32.totalorder %s132, %s133
      %p145 = scmp.eq.s32.totalorder %s25, 5
      %p146 = por %p144, %p145
      %p148 = scmp.ne.s32.totalorder %s133, %s147
      %p149 = scmp.eq.s32.totalorder %s25, 0
      %p150 = por %p148, %p149
      %s152 = sadd.s32 %s151, 1
      %p155 = scmp.eq.s32.totalorder %s19, 5
      %p156 = scmp.ne.s32.totalorder %s151, %s153
      %p157 = scmp.eq.s32.totalorder %s19, 0
      %p158 = por %p156, %p157
      %p159 = scmp.ne.s32.totalorder %s151, %s153
      %p160 = scmp.eq.s32.totalorder %s24, 5
      %p161 = por %p159, %p160
      %p162 = scmp.ne.s32.totalorder %s153, %s154
      %p163 = scmp.eq.s32.totalorder %s24, 0
      %p164 = por %p162, %p163
      %p165 = scmp.ne.s32.totalorder %s153, %s154
      %p166 = scmp.eq.s32.totalorder %s25, 5
      %p167 = por %p165, %p166
      %p169 = scmp.ne.s32.totalorder %s154, %s168
      %p170 = scmp.eq.s32.totalorder %s25, 0
      %p171 = por %p169, %p170
      %s173 = sadd.s32 %s172, 1
      %p176 = scmp.eq.s32.totalorder %s19, 5
      %p177 = scmp.ne.s32.totalorder %s172, %s174
      %p178 = scmp.eq.s32.totalorder %s19, 0
      %p179 = por %p177, %p178
      %p180 = scmp.ne.s32.totalorder %s172, %s174
      %p181 = scmp.eq.s32.totalorder %s24, 5
      %p182 = por %p180, %p181
      %p183 = scmp.ne.s32.totalorder %s174, %s175
      %p184 = scmp.eq.s32.totalorder %s24, 0
      %p185 = por %p183, %p184
      %p186 = scmp.ne.s32.totalorder %s174, %s175
      %p187 = scmp.eq.s32.totalorder %s25, 5
      %p188 = por %p186, %p187
      %p190 = scmp.ne.s32.totalorder %s175, %s189
      %p191 = scmp.eq.s32.totalorder %s25, 0
      %p192 = por %p190, %p191
      %s193 = ssub.s32 %s26, %s38
      %s194 = ssub.s32 %s27, %s34
      %s195 = sor.u32 %s193, %s194
      %p196 = scmp.eq.s32.totalorder %s195, 0
      %s198 = sadd.s32 %s197, 1
      %s199 = scalar_select %p196, %s197, %s198
      %p202 = pneg %p196
      %p203 = scmp.eq.s32.totalorder %s19, 5
      %p204 = por %p202, %p203
      %p205 = scmp.ne.s32.totalorder %s197, %s200
      %p206 = scmp.eq.s32.totalorder %s19, 0
      %p207 = por %p205, %p206
      %p208 = scmp.ne.s32.totalorder %s197, %s200
      %p209 = scmp.eq.s32.totalorder %s24, 5
      %p210 = por %p208, %p209
      %p211 = scmp.ne.s32.totalorder %s200, %s201
      %p212 = scmp.eq.s32.totalorder %s24, 0
      %p213 = por %p211, %p212
      %p214 = scmp.ne.s32.totalorder %s200, %s201
      %p215 = scmp.eq.s32.totalorder %s25, 5
      %p216 = por %p214, %p215
      %p218 = scmp.ne.s32.totalorder %s201, %s217
      %p219 = scmp.eq.s32.totalorder %s25, 0
      %p220 = por %p218, %p219
      %p221 = scmp.le.s32.totalorder 1, %s19
      %p222 = scmp.lt.s32.totalorder %s19, 7
      %p223 = pnand %p221, %p222
      %p224 = pneg %p223
      // Predicated region
      $region9: #{tpu_custom_call.1} parent=5 // pred_check
        _
      $region10: #{tpu_custom_call.1} parent=5 // pred_check_branch
        %226 = sbr.rel (%p223) target = $region12
      $region11: #{tpu_custom_call.1} parent=5 // pred_region
        %s227 = ssub.s32 %s19, 1
        // Predicated region
        $region13: #{tpu_custom_call.1} parent=11 // pred_check
          %p228 = pneg %p80
        $region14: #{tpu_custom_call.1} parent=11 // pred_check_branch
          %230 = sbr.rel (%p228) target = $region16
        $region15: #{tpu_custom_call.1} parent=11 // pred_region
          _
        $region16: #{tpu_custom_call.1} parent=11 // pred_fallthru
          _
        // Predicated region
        $region17: #{tpu_custom_call.1} parent=11 // pred_check
          %p231 = pneg %p101
        $region18: #{tpu_custom_call.1} parent=11 // pred_check_branch
          %233 = sbr.rel (%p231) target = $region20
        $region19: #{tpu_custom_call.1} parent=11 // pred_region
          _
        $region20: #{tpu_custom_call.1} parent=11 // pred_fallthru
          _
        // Predicated region
        $region21: #{tpu_custom_call.1} parent=11 // pred_check
          %p234 = pneg %p122
        $region22: #{tpu_custom_call.1} parent=11 // pred_check_branch
          %236 = sbr.rel (%p234) target = $region24
        $region23: #{tpu_custom_call.1} parent=11 // pred_region
          _
        $region24: #{tpu_custom_call.1} parent=11 // pred_fallthru
          _
        // Predicated region
        $region25: #{tpu_custom_call.1} parent=11 // pred_check
          %p237 = pneg %p143
        $region26: #{tpu_custom_call.1} parent=11 // pred_check_branch
          %239 = sbr.rel (%p237) target = $region28
        $region27: #{tpu_custom_call.1} parent=11 // pred_region
          _
        $region28: #{tpu_custom_call.1} parent=11 // pred_fallthru
          _
        // Predicated region
        $region29: #{tpu_custom_call.1} parent=11 // pred_check
          %p240 = pneg %p164
        $region30: #{tpu_custom_call.1} parent=11 // pred_check_branch
          %242 = sbr.rel (%p240) target = $region32
        $region31: #{tpu_custom_call.1} parent=11 // pred_region
          _
        $region32: #{tpu_custom_call.1} parent=11 // pred_fallthru
          _
        // Predicated region
        $region33: #{tpu_custom_call.1} parent=11 // pred_check
          %p243 = pneg %p185
        $region34: #{tpu_custom_call.1} parent=11 // pred_check_branch
          %245 = sbr.rel (%p243) target = $region36
        $region35: #{tpu_custom_call.1} parent=11 // pred_region
          _
        $region36: #{tpu_custom_call.1} parent=11 // pred_fallthru
          _
      $region12: #{tpu_custom_call.1} parent=5 // pred_fallthru
        _
      %p246 = scmp.lt.s32.totalorder %s19, 6
      // Predicated region
      $region37: #{tpu_custom_call.1} parent=5 // pred_check
        %p247 = pneg %p246
      $region38: #{tpu_custom_call.1} parent=5 // pred_check_branch
        %249 = sbr.rel (%p247) target = $region40
      $region39: #{tpu_custom_call.1} parent=5 // pred_region
        // Predicated region
        $region41: #{tpu_custom_call.1} parent=39 // pred_check
          %p250 = pneg %p53
        $region42: #{tpu_custom_call.1} parent=39 // pred_check_branch
          %252 = sbr.rel (%p250) target = $region44
        $region43: #{tpu_custom_call.1} parent=39 // pred_region
          %s253 = sand.u32 %s43, 1
          %s254 = scalar_lea.sflag [#allocation5], %s253
          %s255 = sand.u32 %s43, 1
          %s256 = smul.addr %s255, 8
          %s257 = scalar_lea.vmem [#allocation4], %s256
          %s259 = ssub.s32 128, 128
          %260 = vsyncadd %s254, %s259
          %s261 = smul.addr %s26, 3
          %s262 = sadd.s32 %s27, %s261
          %s263 = smul.addr %s262, 128
          %s264 = scalar_lea.hbm %s0, %s263
          %s266 = sshll.u32 %s257, 4
          %s267 = int_to_ptr.vmem [resolvable:$true] %s266
          %269 = dma.hbm_to_vmem [thread:$0]  %s264, 128, %s267, %s254
        $region44: #{tpu_custom_call.1} parent=39 // pred_fallthru
          _
      $region40: #{tpu_custom_call.1} parent=5 // pred_fallthru
        _
      %p270 = scmp.le.s32.totalorder 1, %s19
      %p271 = scmp.lt.s32.totalorder %s19, 7
      %p272 = pnand %p270, %p271
      %p273 = pneg %p272
      // Predicated region
      $region45: #{tpu_custom_call.1} parent=5 // pred_check
        _
      $region46: #{tpu_custom_call.1} parent=5 // pred_check_branch
        %275 = sbr.rel (%p272) target = $region48
      $region47: #{tpu_custom_call.1} parent=5 // pred_region
        %s276 = ssub.s32 %s19, 1
        %s277 = sand.u32 %s46, 1
        %s278 = scalar_lea.sflag [#allocation5], %s277
        %s279 = sand.u32 %s46, 1
        %s280 = smul.addr %s279, 8
        %s281 = scalar_lea.vmem [#allocation4], %s280
        // Predicated region
        $region49: #{tpu_custom_call.1} parent=47 // pred_check
          %p282 = pneg %p59
        $region50: #{tpu_custom_call.1} parent=47 // pred_check_branch
          %284 = sbr.rel (%p282) target = $region52
        $region51: #{tpu_custom_call.1} parent=47 // pred_region
          %285 = dma.done %s278, 128
        $region52: #{tpu_custom_call.1} parent=47 // pred_fallthru
          _
        %s286 = sand.u32 %s46, 1
        %s287 = scalar_lea.sflag [#allocation5], %s286
        %s288 = sand.u32 %s46, 1
        %s289 = smul.addr %s288, 8
        %s290 = scalar_lea.vmem [#allocation4], %s289
        %p291 = pneg %p59
        %p292 = pneg %p56
        %p293 = pneg %p80
        %p294 = pneg %p77
        %p295 = pneg %p101
        %p296 = pneg %p98
        %p297 = pneg %p122
        %p298 = pneg %p119
        %p299 = pneg %p143
        %p300 = pneg %p140
        %p301 = pneg %p164
        %p302 = pneg %p161
        %p303 = pneg %p185
        %p304 = pneg %p182
        %p305 = pneg %p213
        %p306 = pneg %p210
        %s307 = sand.u32 %s200, 1
        %s308 = scalar_lea.sflag [#allocation6], %s307
        %s309 = sand.u32 %s200, 1
        %s310 = smul.addr %s309, 8
        %s311 = scalar_lea.vmem [#allocation7], %s310
        %p312 = scmp.eq.s32.totalorder %s29, 0
        // Predicated region
        $region53: #{tpu_custom_call.1} parent=47 // pred_check
          %p313 = pneg %p312
        $region54: #{tpu_custom_call.1} parent=47 // pred_check_branch
          %315 = sbr.rel (%p313) target = $region56
        $region55: #{tpu_custom_call.1} parent=47 // pred_region
          %316 = vst [vmem:[#allocation2] sm:$0xff] 0.0
          %317 = vst [vmem:[#allocation3] sm:$0xff] 0.0
        $region56: #{tpu_custom_call.1} parent=47 // pred_fallthru
          _
        %v318 = vld [vmem:[%s281] sm:$0xff]
        %319 = vst [vmem:[#allocation2 + $0x8] sm:$0xff] %v318
        %v320 = vld [vmem:[#allocation2] sm:$0xff]
        %v321 = vld [vmem:[#allocation2 + $0x8] sm:$0xff]
        %v322 = vld [vmem:[%s1] sm:$0xff]
        %325 = vrot.lane.b32.xlu0 %v320, 124
        %v326 = vpop.permute.xlu0 %325
        %327 = vrot.lane.b32.xlu0 %v321, 124
        %v328 = vpop.permute.xlu0 %327
        %vm329 = vcmask 1014784
        %v330 = vsel %vm329, %v326, %v328
        %332 = vrot.lane.b32.xlu0 %v318, 120
        %v333 = vpop.permute.xlu0 %332
        %v334 = vld [vmem:[%s2] sm:$0xff]
        %336 = vset.pattern.permute.xlu0 0
        %337 = vperm.xlu0 %336, %v334
        %v338 = vpop.permute.xlu0 %337
        %340 = vrot.lane.b32.xlu0 %v320, 8
        %v341 = vpop.permute.xlu0 %340
        %342 = vrot.lane.b32.xlu0 %v321, 8
        %v343 = vpop.permute.xlu0 %342
        %344 = vrot.lane.b32.xlu0 %v330, 8
        %v345 = vpop.permute.xlu0 %344
        %346 = vrot.lane.b32.xlu0 %v328, 8
        %v347 = vpop.permute.xlu0 %346
        %348 = vrot.lane.b32.xlu0 %v333, 8
        %v349 = vpop.permute.xlu0 %348
        %vm350 = vcmask 64512
        %v351 = vsel %vm350, %v341, %v343
        %v352 = vsel %vm350, %v345, %v347
        %vm356 = vcmask 195584
        %v358 = vsel %vm356, %v322, 0
        %360 = vmatprep.subr.mxu0 0.0
        %361 = vmatpush1.msra.mxu0 0.0
        %362 = vmatprep.subr.mxu0 0.0
        %363 = vmatpush1.msra.mxu0 0.0
        %364 = vmatprep.subr.mxu0 0.0
        %365 = vmatpush1.msra.mxu0 0.0
        %366 = vmatprep.subr.mxu0 0.0
        %367 = vmatpush1.msra.mxu0 0.0
        %368 = vmatprep.subr.mxu0 0.0
        %369 = vmatpush1.msra.mxu0 0.0
        %370 = vmatprep.subr.mxu0 0.0
        %371 = vmatpush1.msra.mxu0 0.0
        %372 = vmatprep.subr.mxu0 0.0
        %373 = vmatpush1.msra.mxu0 0.0
        %374 = vmatprep.subr.mxu0 0.0
        %375 = vmatpush1.msra.mxu0 0.0
        %376 = vmatprep.subr.mxu0 0.0
        %377 = vmatpush1.msra.mxu0 0.0
        %378 = vmatprep.subr.mxu0 0.0
        %379 = vmatpush1.msra.mxu0 0.0
        %380 = vmatprep.subr.mxu0 0.0
        %381 = vmatpush1.msra.mxu0 0.0
        %382 = vmatprep.subr.mxu0 0.0
        %383 = vmatpush1.msra.mxu0 0.0
        %384 = vmatprep.subr.mxu0 0.0
        %385 = vmatpush1.msra.mxu0 0.0
        %386 = vmatprep.subr.mxu0 0.0
        %387 = vmatpush1.msra.mxu0 %v349
        %388 = vmatprep.subr.mxu0 0.0
        %389 = vmatpush1.msra.mxu0 %v352
        %390 = vmatprep.subr.mxu0 0.0
        %391 = vmatpush1.msra.mxu0 %v351
        %392 = vmatprep.subr.mxu0 0.0
        %393 = vmatpush2.msra.mxu0 0.0
        %394 = vmatprep.subr.mxu0 0.0
        %395 = vmatpush2.msra.mxu0 0.0
        %396 = vmatprep.subr.mxu0 0.0
        %397 = vmatpush2.msra.mxu0 0.0
        %398 = vmatprep.subr.mxu0 0.0
        %399 = vmatpush2.msra.mxu0 0.0
        %400 = vmatprep.subr.mxu0 0.0
        %401 = vmatpush2.msra.mxu0 0.0
        %402 = vmatprep.subr.mxu0 0.0
        %403 = vmatpush2.msra.mxu0 0.0
        %404 = vmatprep.subr.mxu0 0.0
        %405 = vmatpush2.msra.mxu0 0.0
        %406 = vmatprep.subr.mxu0 0.0
        %407 = vmatpush2.msra.mxu0 0.0
        %408 = vmatprep.subr.mxu0 0.0
        %409 = vmatpush2.msra.mxu0 0.0
        %410 = vmatprep.subr.mxu0 0.0
        %411 = vmatpush2.msra.mxu0 0.0
        %412 = vmatprep.subr.mxu0 0.0
        %413 = vmatpush2.msra.mxu0 0.0
        %414 = vmatprep.subr.mxu0 0.0
        %415 = vmatpush2.msra.mxu0 0.0
        %416 = vmatprep.subr.mxu0 0.0
        %417 = vmatpush2.msra.mxu0 0.0
        %418 = vmatprep.subr.mxu0 0.0
        %419 = vmatpush2.msra.mxu0 0.0
        %420 = vmatprep.subr.mxu0 0.0
        %421 = vmatpush2.msra.mxu0 0.0
        %422 = vmatprep.subr.mxu0 0.0
        %423 = vmatpush2.msra.mxu0 0.0
        %424 = vmatprep.mubr.f32.mxu0 0.0
        %425 = vmatmul.mubr.f32.gmra.mxu0 %v358
        %v426 = vpop.f32.mrf.mxu0
        %v427 = vadd.f32 %v338, %v426
        %v428 = vpop.f32.mrf.mxu0
        %429 = vdwg.mxu0
        %v430 = vmul.f32 %v427, 0.01
        %v431 = vmax.f32 %v427, %v430
        %432 = vst [vmem:[#allocation3 + $0x8] sm:$0xff] %v431
        %v433 = vld [vmem:[#allocation3] sm:$0xff]
        %v434 = vld [vmem:[#allocation3 + $0x8] sm:$0xff]
        %v435 = vld [vmem:[%s3] sm:$0xff]
        %438 = vrot.lane.b32.xlu0 %v433, 124
        %v439 = vpop.permute.xlu0 %438
        %440 = vrot.lane.b32.xlu0 %v434, 124
        %v441 = vpop.permute.xlu0 %440
        %v442 = vsel %vm329, %v439, %v441
        %444 = vrot.lane.b32.xlu0 %v431, 120
        %v445 = vpop.permute.xlu0 %444
        %v446 = vld [vmem:[%s4] sm:$0xff]
        %448 = vset.pattern.permute.xlu0 0
        %449 = vperm.xlu0 %448, %v446
        %v450 = vpop.permute.xlu0 %449
        %452 = vrot.lane.b32.xlu0 %v433, 8
        %v453 = vpop.permute.xlu0 %452
        %454 = vrot.lane.b32.xlu0 %v434, 8
        %v455 = vpop.permute.xlu0 %454
        %456 = vrot.lane.b32.xlu0 %v442, 8
        %v457 = vpop.permute.xlu0 %456
        %458 = vrot.lane.b32.xlu0 %v441, 8
        %v459 = vpop.permute.xlu0 %458
        %460 = vrot.lane.b32.xlu0 %v445, 8
        %v461 = vpop.permute.xlu0 %460
        %v462 = vsel %vm350, %v453, %v455
        %v463 = vsel %vm350, %v457, %v459
        %v468 = vsel %vm356, %v435, 0
        %470 = vmatprep.subr.mxu0 0.0
        %471 = vmatpush1.msra.mxu0 0.0
        %472 = vmatprep.subr.mxu0 0.0
        %473 = vmatpush1.msra.mxu0 0.0
        %474 = vmatprep.subr.mxu0 0.0
        %475 = vmatpush1.msra.mxu0 0.0
        %476 = vmatprep.subr.mxu0 0.0
        %477 = vmatpush1.msra.mxu0 0.0
        %478 = vmatprep.subr.mxu0 0.0
        %479 = vmatpush1.msra.mxu0 0.0
        %480 = vmatprep.subr.mxu0 0.0
        %481 = vmatpush1.msra.mxu0 0.0
        %482 = vmatprep.subr.mxu0 0.0
        %483 = vmatpush1.msra.mxu0 0.0
        %484 = vmatprep.subr.mxu0 0.0
        %485 = vmatpush1.msra.mxu0 0.0
        %486 = vmatprep.subr.mxu0 0.0
        %487 = vmatpush1.msra.mxu0 0.0
        %488 = vmatprep.subr.mxu0 0.0
        %489 = vmatpush1.msra.mxu0 0.0
        %490 = vmatprep.subr.mxu0 0.0
        %491 = vmatpush1.msra.mxu0 0.0
        %492 = vmatprep.subr.mxu0 0.0
        %493 = vmatpush1.msra.mxu0 0.0
        %494 = vmatprep.subr.mxu0 0.0
        %495 = vmatpush1.msra.mxu0 0.0
        %496 = vmatprep.subr.mxu0 0.0
        %497 = vmatpush1.msra.mxu0 %v461
        %498 = vmatprep.subr.mxu0 0.0
        %499 = vmatpush1.msra.mxu0 %v463
        %500 = vmatprep.subr.mxu0 0.0
        %501 = vmatpush1.msra.mxu0 %v462
        %502 = vmatprep.subr.mxu0 0.0
        %503 = vmatpush2.msra.mxu0 0.0
        %504 = vmatprep.subr.mxu0 0.0
        %505 = vmatpush2.msra.mxu0 0.0
        %506 = vmatprep.subr.mxu0 0.0
        %507 = vmatpush2.msra.mxu0 0.0
        %508 = vmatprep.subr.mxu0 0.0
        %509 = vmatpush2.msra.mxu0 0.0
        %510 = vmatprep.subr.mxu0 0.0
        %511 = vmatpush2.msra.mxu0 0.0
        %512 = vmatprep.subr.mxu0 0.0
        %513 = vmatpush2.msra.mxu0 0.0
        %514 = vmatprep.subr.mxu0 0.0
        %515 = vmatpush2.msra.mxu0 0.0
        %516 = vmatprep.subr.mxu0 0.0
        %517 = vmatpush2.msra.mxu0 0.0
        %518 = vmatprep.subr.mxu0 0.0
        %519 = vmatpush2.msra.mxu0 0.0
        %520 = vmatprep.subr.mxu0 0.0
        %521 = vmatpush2.msra.mxu0 0.0
        %522 = vmatprep.subr.mxu0 0.0
        %523 = vmatpush2.msra.mxu0 0.0
        %524 = vmatprep.subr.mxu0 0.0
        %525 = vmatpush2.msra.mxu0 0.0
        %526 = vmatprep.subr.mxu0 0.0
        %527 = vmatpush2.msra.mxu0 0.0
        %528 = vmatprep.subr.mxu0 0.0
        %529 = vmatpush2.msra.mxu0 0.0
        %530 = vmatprep.subr.mxu0 0.0
        %531 = vmatpush2.msra.mxu0 0.0
        %532 = vmatprep.subr.mxu0 0.0
        %533 = vmatpush2.msra.mxu0 0.0
        %534 = vmatprep.mubr.f32.mxu0 0.0
        %535 = vmatmul.mubr.f32.gmra.mxu0 %v468
        %v536 = vpop.f32.mrf.mxu0
        %v537 = vadd.f32 %v450, %v536
        %v538 = vpop.f32.mrf.mxu0
        %539 = vdwg.mxu0
        %v540 = vmul.f32 %v537, 0.01
        %v541 = vmax.f32 %v537, %v540
        %v542 = vld [vmem:[%s5] sm:$0xff]
        %v543 = vld [vmem:[%s6] sm:$0xff]
        %545 = vset.pattern.permute.xlu0 0
        %546 = vperm.xlu0 %545, %v543
        %v547 = vpop.permute.xlu0 %546
        %v550 = vsel %vm350, %v542, 0
        %552 = vmatprep.subr.mxu0 0.0
        %553 = vmatpush1.msra.mxu0 0.0
        %554 = vmatprep.subr.mxu0 0.0
        %555 = vmatpush1.msra.mxu0 0.0
        %556 = vmatprep.subr.mxu0 0.0
        %557 = vmatpush1.msra.mxu0 0.0
        %558 = vmatprep.subr.mxu0 0.0
        %559 = vmatpush1.msra.mxu0 0.0
        %560 = vmatprep.subr.mxu0 0.0
        %561 = vmatpush1.msra.mxu0 0.0
        %562 = vmatprep.subr.mxu0 0.0
        %563 = vmatpush1.msra.mxu0 0.0
        %564 = vmatprep.subr.mxu0 0.0
        %565 = vmatpush1.msra.mxu0 0.0
        %566 = vmatprep.subr.mxu0 0.0
        %567 = vmatpush1.msra.mxu0 0.0
        %568 = vmatprep.subr.mxu0 0.0
        %569 = vmatpush1.msra.mxu0 0.0
        %570 = vmatprep.subr.mxu0 0.0
        %571 = vmatpush1.msra.mxu0 0.0
        %572 = vmatprep.subr.mxu0 0.0
        %573 = vmatpush1.msra.mxu0 0.0
        %574 = vmatprep.subr.mxu0 0.0
        %575 = vmatpush1.msra.mxu0 0.0
        %576 = vmatprep.subr.mxu0 0.0
        %577 = vmatpush1.msra.mxu0 0.0
        %578 = vmatprep.subr.mxu0 0.0
        %579 = vmatpush1.msra.mxu0 0.0
        %580 = vmatprep.subr.mxu0 0.0
        %581 = vmatpush1.msra.mxu0 0.0
        %582 = vmatprep.subr.mxu0 0.0
        %583 = vmatpush1.msra.mxu0 %v318
        %584 = vmatprep.subr.mxu0 0.0
        %585 = vmatpush2.msra.mxu0 0.0
        %586 = vmatprep.subr.mxu0 0.0
        %587 = vmatpush2.msra.mxu0 0.0
        %588 = vmatprep.subr.mxu0 0.0
        %589 = vmatpush2.msra.mxu0 0.0
        %590 = vmatprep.subr.mxu0 0.0
        %591 = vmatpush2.msra.mxu0 0.0
        %592 = vmatprep.subr.mxu0 0.0
        %593 = vmatpush2.msra.mxu0 0.0
        %594 = vmatprep.subr.mxu0 0.0
        %595 = vmatpush2.msra.mxu0 0.0
        %596 = vmatprep.subr.mxu0 0.0
        %597 = vmatpush2.msra.mxu0 0.0
        %598 = vmatprep.subr.mxu0 0.0
        %599 = vmatpush2.msra.mxu0 0.0
        %600 = vmatprep.subr.mxu0 0.0
        %601 = vmatpush2.msra.mxu0 0.0
        %602 = vmatprep.subr.mxu0 0.0
        %603 = vmatpush2.msra.mxu0 0.0
        %604 = vmatprep.subr.mxu0 0.0
        %605 = vmatpush2.msra.mxu0 0.0
        %606 = vmatprep.subr.mxu0 0.0
        %607 = vmatpush2.msra.mxu0 0.0
        %608 = vmatprep.subr.mxu0 0.0
        %609 = vmatpush2.msra.mxu0 0.0
        %610 = vmatprep.subr.mxu0 0.0
        %611 = vmatpush2.msra.mxu0 0.0
        %612 = vmatprep.subr.mxu0 0.0
        %613 = vmatpush2.msra.mxu0 0.0
        %614 = vmatprep.subr.mxu0 0.0
        %615 = vmatpush2.msra.mxu0 0.0
        %616 = vmatprep.mubr.f32.mxu0 0.0
        %617 = vmatmul.mubr.f32.gmra.mxu0 %v550
        %v618 = vpop.f32.mrf.mxu0
        %v619 = vadd.f32 %v547, %v618
        %v620 = vpop.f32.mrf.mxu0
        %621 = vdwg.mxu0
        %v622 = vadd.f32 %v541, %v619
        %623 = vst [vmem:[%s311] sm:$0xff] %v622
        %v624 = vld [vmem:[#allocation2 + $0x8] sm:$0xff]
        %v625 = vld [vmem:[#allocation3 + $0x8] sm:$0xff]
        %vm626 = vcmask 1048512
        %627 = vst.msk [vmem:[#allocation2] sm:$0xff] %vm626, %v624
        %628 = vst.msk [vmem:[#allocation3] sm:$0xff] %vm626, %v625
        %s629 = sand.u32 %s200, 1
        %s630 = scalar_lea.sflag [#allocation6], %s629
        %s631 = sand.u32 %s200, 1
        %s632 = smul.addr %s631, 8
        %s633 = scalar_lea.vmem [#allocation7], %s632
        // Predicated region
        $region57: #{tpu_custom_call.1} parent=47 // pred_check
          %p634 = pneg %p210
        $region58: #{tpu_custom_call.1} parent=47 // pred_check_branch
          %636 = sbr.rel (%p634) target = $region60
        $region59: #{tpu_custom_call.1} parent=47 // pred_region
          %s638 = ssub.s32 128, 128
          %639 = vsyncadd %s630, %s638
          %s640 = smul.addr %s28, 3
          %s641 = sadd.s32 %s29, %s640
          %s642 = smul.addr %s641, 128
          %s643 = scalar_lea.hbm %s7, %s642
          %s645 = sshll.u32 %s633, 4
          %s646 = int_to_ptr.vmem [resolvable:$true] %s645
          %648 = dma.vmem_to_hbm [thread:$0]  %s646, 128, %s643, %s630
        $region60: #{tpu_custom_call.1} parent=47 // pred_fallthru
          _
      $region48: #{tpu_custom_call.1} parent=5 // pred_fallthru
        _
      %p649 = scmp.le.s32.totalorder 2, %s19
      // Predicated region
      $region61: #{tpu_custom_call.1} parent=5 // pred_check
        %p650 = pneg %p649
      $region62: #{tpu_custom_call.1} parent=5 // pred_check_branch
        %652 = sbr.rel (%p650) target = $region64
      $region63: #{tpu_custom_call.1} parent=5 // pred_region
        %s653 = ssub.s32 %s19, 2
        // Predicated region
        $region65: #{tpu_custom_call.1} parent=63 // pred_check
          %p654 = pneg %p216
        $region66: #{tpu_custom_call.1} parent=63 // pred_check_branch
          %656 = sbr.rel (%p654) target = $region68
        $region67: #{tpu_custom_call.1} parent=63 // pred_region
          %s657 = sand.u32 %s201, 1
          %s658 = scalar_lea.sflag [#allocation6], %s657
          %s659 = sand.u32 %s201, 1
          %s660 = smul.addr %s659, 8
          %s661 = scalar_lea.vmem [#allocation7], %s660
          %662 = dma.done %s658, 128
        $region68: #{tpu_custom_call.1} parent=63 // pred_fallthru
          _
      $region64: #{tpu_custom_call.1} parent=5 // pred_fallthru
        _
    $region6: #{tpu_custom_call.1} parent=1 // loop_footer
      %s23 = sadd.s32 1, %s19
    $region7: #{tpu_custom_call.1} parent=1 // loop_footer_branch
      %18 = sbr.rel target = $region3
    $region8: #{tpu_custom_call.1} parent=1 // loop_exit
      _
    %663 = vsyncpa [#allocation5], 1
    %s664 = scalar_lea.sflag [#allocation5], 1
    %665 = vsyncpa %s664, 1
    %666 = vsyncpa [#allocation6], 1
    %s667 = scalar_lea.sflag [#allocation6], 1
    %668 = vsyncpa %s667, 1

</llo_original>
